<compile_context>
chip_gen: v5e
topology: v5e:2x2
jax: 0.10.0
libtpu: 0.0.40
codegen_flags: <defaults>
</compile_context>

<pallas_src>
import functools

import jax
import jax.numpy as jnp
from jax.experimental import pallas as pl
from jax.experimental.pallas import tpu as pltpu


def _round_up(x, m):
    return ((x + m - 1) // m) * m


def _maybe_pad2d(a, rows, cols):
    pr, pc = rows - a.shape[0], cols - a.shape[1]
    if pr == 0 and pc == 0:
        return a
    return jnp.pad(a, ((0, pr), (0, pc)))


def _ffn_kernel(x_ref, w1_ref, b1_ref, w2_ref, b2_ref, o_ref, acc_ref):
    # x_ref : (tm, d_model_p)      w1_ref: (d_model_p, tff)   b1_ref: (1, tff)
    # w2_ref: (tff, d_model_p)     b2_ref: (1, d_model_p)
    # o_ref : (tm, d_model_p)      acc_ref: (tm, d_model_p) f32 scratch
    k = pl.program_id(1)

    @pl.when(k == 0)
    def _init():
        # Seed the accumulator with the second bias (added exactly once).
        acc_ref[...] = jnp.broadcast_to(
            b2_ref[...].astype(jnp.float32), acc_ref.shape)

    # First matmul on the MXU with f32 accumulation; bias + ReLU on the VPU.
    h = jnp.dot(x_ref[...], w1_ref[...], preferred_element_type=jnp.float32)
    h = jnp.maximum(h + b1_ref[...].astype(jnp.float32), 0.0)

    # Second matmul accumulates into the resident f32 accumulator.
    acc_ref[...] += jnp.dot(h.astype(w2_ref.dtype), w2_ref[...],
                            preferred_element_type=jnp.float32)

    @pl.when(k == pl.num_programs(1) - 1)
    def _finalize():
        o_ref[...] = acc_ref[...].astype(o_ref.dtype)


@functools.partial(jax.jit, static_argnames=("tm", "tff", "compute_dtype"))
def position_wise_feed_forward(x, w1, b1, w2, b2, *, tm=256, tff=512,
                               compute_dtype=None):
    """x: [batch, seq, d_model]; w1: [d_model, d_ff]; b1: [d_ff];
    w2: [d_ff, d_model]; b2: [d_model].  Weights are stored (in, out),
    i.e. PyTorch nn.Linear weights pre-transposed."""
    batch, seq, d_model = x.shape
    d_ff = w1.shape[1]
    tokens = batch * seq
    out_dtype = x.dtype

    # Optional reduced-precision MXU inputs (f32 accumulation stays in-kernel).
    if compute_dtype is not None:
        x = x.astype(compute_dtype)
        w1 = w1.astype(compute_dtype)
        w2 = w2.astype(compute_dtype)

    # --- padded / clamped tile sizes -------------------------------------
    # tm: multiple of 8 sublanes; clamp for tiny inputs so 16 tokens don't pad
    # to 256.  tff / d_model: lane-dense 128 multiples.
    tm_eff = _round_up(min(tm, _round_up(tokens, 8)), 8)
    tokens_p = _round_up(tokens, tm_eff)

    d_model_p = _round_up(d_model, 128)
    tff_eff = _round_up(min(tff, _round_up(d_ff, 128)), 128)
    d_ff_p = _round_up(d_ff, tff_eff)

    # --- zero-pad operands (only when needed) ------------------------------
    x2d = _maybe_pad2d(x.reshape(tokens, d_model), tokens_p, d_model_p)
    w1p = _maybe_pad2d(w1, d_model_p, d_ff_p)
    b1p = _maybe_pad2d(b1.reshape(1, d_ff), 1, d_ff_p)
    w2p = _maybe_pad2d(w2, d_ff_p, d_model_p)
    b2p = _maybe_pad2d(b2.reshape(1, d_model), 1, d_model_p)

    grid = (tokens_p // tm_eff, d_ff_p // tff_eff)

    bytes_per_elem = jnp.dtype(x2d.dtype).itemsize
    cost = pl.CostEstimate(
        flops=4 * tokens_p * d_model_p * d_ff_p,   # two matmuls, 2*M*N*K each
        transcendentals=0,
        bytes_accessed=bytes_per_elem * (
            tokens_p * d_model_p * 2                # x in + out
            + grid[0] * 2 * d_ff_p * d_model_p      # W1/W2 streamed per M tile
            + d_ff_p + d_model_p),                  # biases
    )

    out2d = pl.pallas_call(
        _ffn_kernel,
        out_shape=jax.ShapeDtypeStruct((tokens_p, d_model_p), out_dtype),
        grid_spec=pltpu.PrefetchScalarGridSpec(
            num_scalar_prefetch=0,
            grid=grid,
            in_specs=[
                pl.BlockSpec((tm_eff, d_model_p), lambda i, k: (i, 0)),   # x tile
                pl.BlockSpec((d_model_p, tff_eff), lambda i, k: (0, k)),  # W1 slab
                pl.BlockSpec((1, tff_eff), lambda i, k: (0, k)),          # b1 slab
                pl.BlockSpec((tff_eff, d_model_p), lambda i, k: (k, 0)),  # W2 slab
                pl.BlockSpec((1, d_model_p), lambda i, k: (0, 0)),        # b2
            ],
            out_specs=pl.BlockSpec((tm_eff, d_model_p), lambda i, k: (i, 0)),
            scratch_shapes=[pltpu.VMEM((tm_eff, d_model_p), jnp.float32)],
        ),
        compiler_params=pltpu.CompilerParams(
            dimension_semantics=("parallel", "arbitrary"),
            vmem_limit_bytes=64 * 1024 * 1024,
        ),
        cost_estimate=cost,
    )(x2d, w1p, b1p, w2p, b2p)

    return out2d[:tokens, :d_model].reshape(batch, seq, d_model)


def _init_params(key, d_model, d_ff, dtype=jnp.float32):
    # Deterministic synthetic init mimicking nn.Linear's uniform(-1/sqrt(in), 1/sqrt(in)).
    k1, k2, k3, k4 = jax.random.split(key, 4)
    lim1 = 1.0 / (d_model ** 0.5)
    lim2 = 1.0 / (d_ff ** 0.5)
    # Stored already transposed relative to PyTorch: (in, out)
    w1 = jax.random.uniform(k1, (d_model, d_ff), dtype, -lim1, lim1)
    b1 = jax.random.uniform(k2, (d_ff,), dtype, -lim1, lim1)
    w2 = jax.random.uniform(k3, (d_ff, d_model), dtype, -lim2, lim2)
    b2 = jax.random.uniform(k4, (d_model,), dtype, -lim2, lim2)
    return w1, b1, w2, b2


if __name__ == "__main__":
    # Small shapes consistent with the module's forward.
    batch, seq, d_model, d_ff = 2, 8, 32, 64

    key = jax.random.PRNGKey(0)
    kx, kp = jax.random.split(key)
    x = jax.random.normal(kx, (batch, seq, d_model), jnp.float32)
    w1, b1, w2, b2 = _init_params(kp, d_model, d_ff)

    out = jax.block_until_ready(position_wise_feed_forward(x, w1, b1, w2, b2))

    # Reference in plain JAX (same math as the PyTorch module).
    ref = jnp.maximum(x @ w1 + b1, 0.0) @ w2 + b2
    assert out.shape == (batch, seq, d_model)
    assert jnp.allclose(out, ref, atol=1e-5, rtol=1e-5), (
        float(jnp.max(jnp.abs(out - ref))))

    # Non-toy, non-divisible shape: exercises token padding + reduction axis.
    B2, S2, DM2, DF2 = 3, 70, 256, 1024           # tokens=210 (not a tile multiple)
    x2 = jax.random.normal(jax.random.PRNGKey(1), (B2, S2, DM2), jnp.float32)
    p2 = _init_params(jax.random.PRNGKey(2), DM2, DF2)
    out2 = jax.block_until_ready(
        position_wise_feed_forward(x2, *p2, tm=256, tff=512))
    ref2 = jnp.maximum(x2 @ p2[0] + p2[1], 0.0) @ p2[2] + p2[3]
    assert jnp.allclose(out2, ref2, atol=1e-4, rtol=1e-4), (
        float(jnp.max(jnp.abs(out2 - ref2))))

    # bf16 compute path (f32 accumulation in-kernel) — looser tolerance.
    out3 = jax.block_until_ready(
        position_wise_feed_forward(x2, *p2, compute_dtype=jnp.bfloat16))
    assert jnp.allclose(out3, ref2, atol=5e-2, rtol=5e-2), (
        float(jnp.max(jnp.abs(out3 - ref2))))

    print("KERNEL_OK")
</pallas_src>

<mosaic_0001>
module attributes {stable_mosaic.version = 11 : i64} {
  func.func @_ffn_kernel(%arg0: i32, %arg1: i32, %arg2: memref<16x128xf32, #tpu.memory_space<vmem>>, %arg3: memref<128x128xf32, #tpu.memory_space<vmem>>, %arg4: memref<1x128xf32, #tpu.memory_space<vmem>>, %arg5: memref<128x128xf32, #tpu.memory_space<vmem>>, %arg6: memref<1x128xf32, #tpu.memory_space<vmem>>, %arg7: memref<16x128xf32, #tpu.memory_space<vmem>>, %arg8: memref<16x128xf32, #tpu.memory_space<vmem>>) attributes {dimension_semantics = [#tpu.dimension_semantics<parallel>, #tpu.dimension_semantics<arbitrary>], iteration_bounds = array<i64: 1, 1>, scalar_prefetch = 0 : i64, scratch_operands = 1 : i64, tpu.core_type = #tpu.core_type<tc>, window_params = [{transform_indices = @transform_0, window_bounds = array<i64: 16, 128>}, {transform_indices = @transform_1, window_bounds = array<i64: 128, 128>}, {transform_indices = @transform_2, window_bounds = array<i64: 1, 128>}, {transform_indices = @transform_3, window_bounds = array<i64: 128, 128>}, {pipeline_mode = #tpu.pipeline_mode<synchronous>, transform_indices = @transform_4, window_bounds = array<i64: 1, 128>}, {transform_indices = @transform_5, window_bounds = array<i64: 16, 128>}]} {
    %c0_i32 = arith.constant 0 : i32
    %0 = arith.cmpi eq, %arg1, %c0_i32 : i32
    %1 = arith.extui %0 : i1 to i32
    %c0_i32_0 = arith.constant 0 : i32
    %2 = arith.cmpi ne, %1, %c0_i32_0 : i32
    scf.if %2 {
      %c0_16 = arith.constant 0 : index
      %c0_17 = arith.constant 0 : index
      %19 = vector.load %arg6[%c0_16, %c0_17] : memref<1x128xf32, #tpu.memory_space<vmem>>, vector<1x128xf32>
      %20 = vector.shape_cast %19 : vector<1x128xf32> to vector<1x128xf32>
      %21 = vector.broadcast %20 : vector<1x128xf32> to vector<16x128xf32>
      %c0_18 = arith.constant 0 : index
      %c0_19 = arith.constant 0 : index
      %22 = vector.load %arg8[%c0_18, %c0_19] : memref<16x128xf32, #tpu.memory_space<vmem>>, vector<16x128xf32>
      tpu.vector_store %arg8[%c0_18, %c0_19], %21 {strides = array<i32>} : memref<16x128xf32, #tpu.memory_space<vmem>>, vector<16x128xf32>,
    } else {
    }
    %c0 = arith.constant 0 : index
    %c0_1 = arith.constant 0 : index
    %3 = vector.load %arg2[%c0, %c0_1] : memref<16x128xf32, #tpu.memory_space<vmem>>, vector<16x128xf32>
    %c0_2 = arith.constant 0 : index
    %c0_3 = arith.constant 0 : index
    %4 = vector.load %arg3[%c0_2, %c0_3] : memref<128x128xf32, #tpu.memory_space<vmem>>, vector<128x128xf32>
    %cst = arith.constant dense<0.000000e+00> : vector<16x128xf32>
    %5 = tpu.matmul %3, %4, %cst {dimension_numbers = #tpu.dot_dimension_numbers<[1], [0], [0], [1], [0, 0, 1, 1], [], []>} : vector<16x128xf32>, vector<128x128xf32>, vector<16x128xf32> -> vector<16x128xf32>
    %c0_4 = arith.constant 0 : index
    %c0_5 = arith.constant 0 : index
    %6 = vector.load %arg4[%c0_4, %c0_5] : memref<1x128xf32, #tpu.memory_space<vmem>>, vector<1x128xf32>
    %7 = vector.broadcast %6 : vector<1x128xf32> to vector<16x128xf32>
    %8 = arith.addf %5, %7 : vector<16x128xf32>
    %cst_6 = arith.constant 0.000000e+00 : f32
    %9 = vector.broadcast %cst_6 : f32 to vector<16x128xf32>
    %10 = arith.maximumf %8, %9 : vector<16x128xf32>
    %c0_7 = arith.constant 0 : index
    %c0_8 = arith.constant 0 : index
    %11 = vector.load %arg8[%c0_7, %c0_8] : memref<16x128xf32, #tpu.memory_space<vmem>>, vector<16x128xf32>
    %c0_9 = arith.constant 0 : index
    %c0_10 = arith.constant 0 : index
    %12 = vector.load %arg5[%c0_9, %c0_10] : memref<128x128xf32, #tpu.memory_space<vmem>>, vector<128x128xf32>
    %cst_11 = arith.constant dense<0.000000e+00> : vector<16x128xf32>
    %13 = tpu.matmul %10, %12, %cst_11 {dimension_numbers = #tpu.dot_dimension_numbers<[1], [0], [0], [1], [0, 0, 1, 1], [], []>} : vector<16x128xf32>, vector<128x128xf32>, vector<16x128xf32> -> vector<16x128xf32>
    %14 = arith.addf %11, %13 : vector<16x128xf32>
    %c0_12 = arith.constant 0 : index
    %c0_13 = arith.constant 0 : index
    %15 = vector.load %arg8[%c0_12, %c0_13] : memref<16x128xf32, #tpu.memory_space<vmem>>, vector<16x128xf32>
    tpu.vector_store %arg8[%c0_12, %c0_13], %14 {strides = array<i32>} : memref<16x128xf32, #tpu.memory_space<vmem>>, vector<16x128xf32>,
    %c0_i32_14 = arith.constant 0 : i32
    %16 = arith.cmpi eq, %arg1, %c0_i32_14 : i32
    %17 = arith.extui %16 : i1 to i32
    %c0_i32_15 = arith.constant 0 : i32
    %18 = arith.cmpi ne, %17, %c0_i32_15 : i32
    scf.if %18 {
      %c0_16 = arith.constant 0 : index
      %c0_17 = arith.constant 0 : index
      %19 = vector.load %arg8[%c0_16, %c0_17] : memref<16x128xf32, #tpu.memory_space<vmem>>, vector<16x128xf32>
      %c0_18 = arith.constant 0 : index
      %c0_19 = arith.constant 0 : index
      %20 = vector.load %arg7[%c0_18, %c0_19] : memref<16x128xf32, #tpu.memory_space<vmem>>, vector<16x128xf32>
      tpu.vector_store %arg7[%c0_18, %c0_19], %19 {strides = array<i32>} : memref<16x128xf32, #tpu.memory_space<vmem>>, vector<16x128xf32>,
    } else {
    }
    return
  }
  func.func @transform_0(%arg0: i32, %arg1: i32) -> (i32, i32) {
    %c0_i32 = arith.constant 0 : i32
    %c0_i32_0 = arith.constant 0 : i32
    return %arg0, %c0_i32 : i32, i32
  }
  func.func @transform_1(%arg0: i32, %arg1: i32) -> (i32, i32) {
    %c0_i32 = arith.constant 0 : i32
    %c0_i32_0 = arith.constant 0 : i32
    return %c0_i32, %arg1 : i32, i32
  }
  func.func @transform_2(%arg0: i32, %arg1: i32) -> (i32, i32) {
    %c0_i32 = arith.constant 0 : i32
    %c0_i32_0 = arith.constant 0 : i32
    return %c0_i32, %arg1 : i32, i32
  }
  func.func @transform_3(%arg0: i32, %arg1: i32) -> (i32, i32) {
    %c0_i32 = arith.constant 0 : i32
    %c0_i32_0 = arith.constant 0 : i32
    return %arg1, %c0_i32 : i32, i32
  }
  func.func @transform_4(%arg0: i32, %arg1: i32) -> (i32, i32) {
    %c0_i32 = arith.constant 0 : i32
    %c0_i32_0 = arith.constant 0 : i32
    %c0_i32_1 = arith.constant 0 : i32
    return %c0_i32, %c0_i32_0 : i32, i32
  }
  func.func @transform_5(%arg0: i32, %arg1: i32) -> (i32, i32) {
    %c0_i32 = arith.constant 0 : i32
    %c0_i32_0 = arith.constant 0 : i32
    return %arg0, %c0_i32 : i32, i32
  }
}

</mosaic_0001>

<llo_original>
// kernel: position_wise_feed_forward.1
$region0: #{position_wise_feed_forward.1}
  #allocation0 [shape = 'u32[]', space=smem, size = 0x4, offset = 0x4, fixed_abs, tag = 'smem constant byte address 0x4 - core index']
  #allocation1 [shape = 'u32[72,128]{1,0:T(1,128)}', space=vmem, size = 0x9000, scoped, tag = 'internal scratch']
  #allocation2 [shape = 'f32[16,128]{1,0:T(8,128)}', space=vmem, size = 0x2000, scoped, tag = 'scratch operand']
  %s0 = inlined_call_operand.vmem [shape: f32[16,128], index: 0, kind: input, shape index: {}]
  %s1 = inlined_call_operand.vmem [shape: f32[128,128], index: 1, kind: input, shape index: {}]
  %s2 = inlined_call_operand.vmem [shape: f32[1,128], index: 2, kind: input, shape index: {}]
  %s3 = inlined_call_operand.vmem [shape: f32[128,128], index: 3, kind: input, shape index: {}]
  %s4 = inlined_call_operand.vmem [shape: f32[1,128], index: 4, kind: input, shape index: {}]
  %s5 = inlined_call_operand.vmem [shape: f32[16,128], index: 5, kind: output, shape index: {}]
  %s6 = sld [smem:[#allocation0]]
  $region38: #{position_wise_feed_forward.1} parent=0
    _
  %s8 = ssub.s32 1, %s6
  %s9 = scalar_select 0, %s8, %s6
  // Predicated region
  $region2: #{position_wise_feed_forward.1} parent=0 // pred_check
    _
  $region3: #{position_wise_feed_forward.1} parent=0 // pred_check_branch
    %11 = sbr.rel (0) target = $region5
  $region4: #{position_wise_feed_forward.1} parent=0 // pred_region
    _
  $region5: #{position_wise_feed_forward.1} parent=0 // pred_fallthru
    _
  // Predicated region
  $region6: #{position_wise_feed_forward.1} parent=0 // pred_check
    _
  $region7: #{position_wise_feed_forward.1} parent=0 // pred_check_branch
    %13 = sbr.rel (0) target = $region9
  $region8: #{position_wise_feed_forward.1} parent=0 // pred_region
    _
  $region9: #{position_wise_feed_forward.1} parent=0 // pred_fallthru
    _
  // Predicated region
  $region10: #{position_wise_feed_forward.1} parent=0 // pred_check
    _
  $region11: #{position_wise_feed_forward.1} parent=0 // pred_check_branch
    %15 = sbr.rel (0) target = $region13
  $region12: #{position_wise_feed_forward.1} parent=0 // pred_region
    _
  $region13: #{position_wise_feed_forward.1} parent=0 // pred_fallthru
    _
  // Predicated region
  $region14: #{position_wise_feed_forward.1} parent=0 // pred_check
    _
  $region15: #{position_wise_feed_forward.1} parent=0 // pred_check_branch
    %17 = sbr.rel (0) target = $region17
  $region16: #{position_wise_feed_forward.1} parent=0 // pred_region
    _
  $region17: #{position_wise_feed_forward.1} parent=0 // pred_fallthru
    _
  // Predicated region
  $region18: #{position_wise_feed_forward.1} parent=0 // pred_check
    _
  $region19: #{position_wise_feed_forward.1} parent=0 // pred_check_branch
    %19 = sbr.rel (0) target = $region21
  $region20: #{position_wise_feed_forward.1} parent=0 // pred_region
    _
  $region21: #{position_wise_feed_forward.1} parent=0 // pred_fallthru
    _
  %p20 = scmp.eq.s32.totalorder 0, 0
  // Predicated region
  $region22: #{position_wise_feed_forward.1} parent=0 // pred_check
    %p21 = pneg %p20
  $region23: #{position_wise_feed_forward.1} parent=0 // pred_check_branch
    %23 = sbr.rel (%p21) target = $region25
  $region24: #{position_wise_feed_forward.1} parent=0 // pred_region
    %v24 = vld [vmem:[%s4] sm:$0x1]
    %v26 = vperm.slane %v24, 0
    %28 = vst [vmem:[#allocation2] sm:$0xff] %v26
    %29 = vst [vmem:[#allocation2 + $0x8] sm:$0xff] %v26
  $region25: #{position_wise_feed_forward.1} parent=0 // pred_fallthru
    _
  %v30 = vld [vmem:[%s0] sm:$0xff]
  %v31 = vld [vmem:[%s0 + $0x8] sm:$0xff]
  %v32 = vld [vmem:[%s1] sm:$0xff]
  %v33 = vld [vmem:[%s1 + $0x8] sm:$0xff]
  %v34 = vld [vmem:[%s1 + $0x10] sm:$0xff]
  %v35 = vld [vmem:[%s1 + $0x18] sm:$0xff]
  %v36 = vld [vmem:[%s1 + $0x20] sm:$0xff]
  %v37 = vld [vmem:[%s1 + $0x28] sm:$0xff]
  %v38 = vld [vmem:[%s1 + $0x30] sm:$0xff]
  %v39 = vld [vmem:[%s1 + $0x38] sm:$0xff]
  %v40 = vld [vmem:[%s1 + $0x40] sm:$0xff]
  %v41 = vld [vmem:[%s1 + $0x48] sm:$0xff]
  %v42 = vld [vmem:[%s1 + $0x50] sm:$0xff]
  %v43 = vld [vmem:[%s1 + $0x58] sm:$0xff]
  %v44 = vld [vmem:[%s1 + $0x60] sm:$0xff]
  %v45 = vld [vmem:[%s1 + $0x68] sm:$0xff]
  %v46 = vld [vmem:[%s1 + $0x70] sm:$0xff]
  %v47 = vld [vmem:[%s1 + $0x78] sm:$0xff]
  %v48 = vld [vmem:[%s2] sm:$0x1]
  %v50 = vperm.slane %v48, 0
  %52 = vmatpush.msra.mxu0 %v47
  %53 = vmatpush.msra.mxu0 %v46
  %54 = vmatpush.msra.mxu0 %v45
  %55 = vmatpush.msra.mxu0 %v44
  %56 = vmatpush.msra.mxu0 %v43
  %57 = vmatpush.msra.mxu0 %v42
  %58 = vmatpush.msra.mxu0 %v41
  %59 = vmatpush.msra.mxu0 %v40
  %60 = vmatpush.msra.mxu0 %v39
  %61 = vmatpush.msra.mxu0 %v38
  %62 = vmatpush.msra.mxu0 %v37
  %63 = vmatpush.msra.mxu0 %v36
  %64 = vmatpush.msra.mxu0 %v35
  %65 = vmatpush.msra.mxu0 %v34
  %66 = vmatpush.msra.mxu0 %v33
  %67 = vmatpush.msra.mxu0 %v32
  %68 = vmatmul.f32.gmra.mxu0 %v30
  %v69 = vpop.f32.mrf.mxu0
  %v70 = vadd.f32 %v50, %v69
  %71 = vmatmul.f32.gmra.mxu0 %v31
  %v72 = vpop.f32.mrf.mxu0
  %v73 = vadd.f32 %v50, %v72
  %74 = vdwg.mxu0
  %v75 = vmax.f32 %v70, 0.0
  %v76 = vmax.f32 %v73, 0.0
  %v77 = vld [vmem:[#allocation2] sm:$0xff]
  %v78 = vld [vmem:[#allocation2 + $0x8] sm:$0xff]
  %v79 = vld [vmem:[%s3] sm:$0xff]
  %v80 = vld [vmem:[%s3 + $0x8] sm:$0xff]
  %v81 = vld [vmem:[%s3 + $0x10] sm:$0xff]
  %v82 = vld [vmem:[%s3 + $0x18] sm:$0xff]
  %v83 = vld [vmem:[%s3 + $0x20] sm:$0xff]
  %v84 = vld [vmem:[%s3 + $0x28] sm:$0xff]
  %v85 = vld [vmem:[%s3 + $0x30] sm:$0xff]
  %v86 = vld [vmem:[%s3 + $0x38] sm:$0xff]
  %v87 = vld [vmem:[%s3 + $0x40] sm:$0xff]
  %v88 = vld [vmem:[%s3 + $0x48] sm:$0xff]
  %v89 = vld [vmem:[%s3 + $0x50] sm:$0xff]
  %v90 = vld [vmem:[%s3 + $0x58] sm:$0xff]
  %v91 = vld [vmem:[%s3 + $0x60] sm:$0xff]
  %v92 = vld [vmem:[%s3 + $0x68] sm:$0xff]
  %v93 = vld [vmem:[%s3 + $0x70] sm:$0xff]
  %v94 = vld [vmem:[%s3 + $0x78] sm:$0xff]
  %95 = vmatpush.msra.mxu0 %v94
  %96 = vmatpush.msra.mxu0 %v93
  %97 = vmatpush.msra.mxu0 %v92
  %98 = vmatpush.msra.mxu0 %v91
  %99 = vmatpush.msra.mxu0 %v90
  %100 = vmatpush.msra.mxu0 %v89
  %101 = vmatpush.msra.mxu0 %v88
  %102 = vmatpush.msra.mxu0 %v87
  %103 = vmatpush.msra.mxu0 %v86
  %104 = vmatpush.msra.mxu0 %v85
  %105 = vmatpush.msra.mxu0 %v84
  %106 = vmatpush.msra.mxu0 %v83
  %107 = vmatpush.msra.mxu0 %v82
  %108 = vmatpush.msra.mxu0 %v81
  %109 = vmatpush.msra.mxu0 %v80
  %110 = vmatpush.msra.mxu0 %v79
  %111 = vmatmul.f32.gmra.mxu0 %v75
  %v112 = vpop.f32.mrf.mxu0
  %v113 = vadd.f32 0.0, %v112
  %114 = vmatmul.f32.gmra.mxu0 %v76
  %v115 = vpop.f32.mrf.mxu0
  %v116 = vadd.f32 0.0, %v115
  %117 = vdwg.mxu0
  %v118 = vadd.f32 %v77, %v113
  %v119 = vadd.f32 %v78, %v116
  %120 = vst [vmem:[#allocation2] sm:$0xff] %v118
  %121 = vst [vmem:[#allocation2 + $0x8] sm:$0xff] %v119
  // Predicated region
  $region26: #{position_wise_feed_forward.1} parent=0 // pred_check
    %p122 = pneg %p20
  $region27: #{position_wise_feed_forward.1} parent=0 // pred_check_branch
    %124 = sbr.rel (%p122) target = $region29
  $region28: #{position_wise_feed_forward.1} parent=0 // pred_region
    %v125 = vld [vmem:[#allocation2] sm:$0xff]
    %v126 = vld [vmem:[#allocation2 + $0x8] sm:$0xff]
    %127 = vst [vmem:[%s5] sm:$0xff] %v125
    %128 = vst [vmem:[%s5 + $0x8] sm:$0xff] %v126
  $region29: #{position_wise_feed_forward.1} parent=0 // pred_fallthru
    _
  // Predicated region
  $region30: #{position_wise_feed_forward.1} parent=0 // pred_check
    _
  $region31: #{position_wise_feed_forward.1} parent=0 // pred_check_branch
    %130 = sbr.rel (0) target = $region33
  $region32: #{position_wise_feed_forward.1} parent=0 // pred_region
    _
  $region33: #{position_wise_feed_forward.1} parent=0 // pred_fallthru
    _
  // Predicated region
  $region34: #{position_wise_feed_forward.1} parent=0 // pred_check
    _
  $region35: #{position_wise_feed_forward.1} parent=0 // pred_check_branch
    %132 = sbr.rel (0) target = $region37
  $region36: #{position_wise_feed_forward.1} parent=0 // pred_region
    _
  $region37: #{position_wise_feed_forward.1} parent=0 // pred_fallthru
    _

</llo_original>
